<compile_context>
chip_gen: v7x
topology: tpu7x:2x2x1
jax: 0.10.0
libtpu: 0.0.40
codegen_flags: <defaults>
</compile_context>

<pallas_src>
import functools
import math

import jax
import jax.numpy as jnp
from jax.experimental import pallas as pl
from jax.experimental.pallas import tpu as pltpu


def _round_up(a, b):
    return (a + b - 1) // b * b


def _adms_kernel(x_ref, wt_ref, lab_ref, loss_ref,
                 tgt_ref, rsum_ref, *,
                 s, ml, ms, threshold, n_valid, c_valid, tile_c,
                 mask_rows, mask_cols):
    j = pl.program_id(1)

    @pl.when(j == 0)
    def _init():
        tgt_ref[...] = jnp.zeros_like(tgt_ref)
        rsum_ref[...] = jnp.zeros_like(rsum_ref)

    # cosine logits on the MXU: (tile_n, D) @ (D, tile_c), NN form (W was
    # pre-transposed once in the wrapper), bf16/bf16 -> f32 accumulate.
    wf = jnp.dot(x_ref[...], wt_ref[...], preferred_element_type=jnp.float32)
    wf = jnp.clip(wf, -1.0, 1.0)                                 # (tile_n, tile_c)

    lab = lab_ref[...]                                           # (tile_n, 1) int32
    col = j * tile_c + jax.lax.broadcasted_iota(jnp.int32, wf.shape, 1)
    onehot = col == lab                                          # bool (tile_n, tile_c)

    # running target logit wf[i, labels[i]] (hit in exactly one C tile per row)
    tgt_ref[...] += jnp.sum(jnp.where(onehot, wf, 0.0), axis=1, keepdims=True)

    # running row-sum of exp(s * wf) over non-target (and non-padded) columns;
    # the two masks are fused into a single select over the tile.
    keep = jnp.logical_not(onehot)
    if mask_cols:  # static: only when C was padded up to a lane multiple
        keep = jnp.logical_and(keep, col < c_valid)
    rsum_ref[...] += jnp.sum(jnp.where(keep, jnp.exp(s * wf), 0.0),
                             axis=1, keepdims=True)

    @pl.when(j == pl.num_programs(1) - 1)
    def _finalize():
        m = jnp.where(lab <= threshold, jnp.float32(ml), jnp.float32(ms))
        numerator = s * (tgt_ref[...] - m)                       # (tile_n, 1)
        denom = jnp.exp(numerator) + rsum_ref[...]
        row_l = numerator - jnp.log(denom)                       # (tile_n, 1)
        if mask_rows:  # static: only when N was padded
            row = (pl.program_id(0) * row_l.shape[0]
                   + jax.lax.broadcasted_iota(jnp.int32, row_l.shape, 0))
            row_l = jnp.where(row < n_valid, row_l, 0.0)
        loss_ref[...] = row_l


def adms_softmax_loss(x, weight, labels, *, s=30.0, ml=0.4, ms=0.1,
                      real_label_max=5, compute_dtype=jnp.bfloat16):
    """x: (N, in_features), weight: (out_features, in_features),
    labels: (N,) int.  Returns scalar f32 loss (same semantics as the PyTorch
    AdMSoftmaxLoss.forward).  compute_dtype controls the streamed operand
    dtype (bf16 = fast path, f32 = exact-parity path)."""
    n, d = x.shape
    c, d2 = weight.shape
    assert d == d2 and labels.shape == (n,)

    # One-time O(N*D)/O(C*D) normalizations (F.normalize: x / max(||x||, 1e-12)).
    x32 = x.astype(jnp.float32)
    xn = x32 * jax.lax.rsqrt(
        jnp.maximum(jnp.sum(x32 * x32, axis=1, keepdims=True), 1e-24))
    w32 = weight.astype(jnp.float32)
    wn = w32 * jax.lax.rsqrt(
        jnp.maximum(jnp.sum(w32 * w32, axis=1, keepdims=True), 1e-24))
    # One-time transpose so the kernel's matmul is a plain NN dot (no per-step
    # XLU transpose of the (tile_c, D) weight block).
    wt = wn.T                                                    # (D, C)

    # Tile sizing: sublane-aligned N, lane-dense C, sized under a VMEM budget
    # that is safe on v5e/v6e (128 MiB) and v7x (64 MiB physical per core).
    itemsize = jnp.dtype(compute_dtype).itemsize
    tile_n = 256 if n >= 256 else _round_up(n, 8)
    tile_c = 512 if c >= 512 else _round_up(min(c, 512), 128)

    def _vmem_bytes(tn, tc):
        lane = 128
        blocks = 2 * (tn * d * itemsize          # x rows (double-buffered)
                      + d * tc * itemsize        # W tile (double-buffered)
                      + tn * lane * 4            # labels (lane-padded)
                      + tn * lane * 4)           # per-row loss output
        scratch = 2 * tn * lane * 4              # target + running-sum accumulators
        return blocks + scratch

    budget = 30 * 1024 * 1024
    while _vmem_bytes(tile_n, tile_c) > budget:
        if tile_c > 256:
            tile_c //= 2
        elif tile_n > 64:
            tile_n = max(8, _round_up(tile_n // 2, 8))
        elif tile_c > 128:
            tile_c //= 2
        elif tile_n > 8:
            tile_n = max(8, _round_up(tile_n // 2, 8))
        else:
            break

    n_pad = _round_up(n, tile_n)
    c_pad = _round_up(c, tile_c)

    xn = xn.astype(compute_dtype)
    wt = wt.astype(compute_dtype)
    lab2d = labels.astype(jnp.int32).reshape(n, 1)
    if n_pad != n:
        xn = jnp.pad(xn, ((0, n_pad - n), (0, 0)))
        lab2d = jnp.pad(lab2d, ((0, n_pad - n), (0, 0)))
    if c_pad != c:
        wt = jnp.pad(wt, ((0, 0), (0, c_pad - c)))

    grid = (n_pad // tile_n, c_pad // tile_c)

    # Only raise the scoped-VMEM request when the working set actually exceeds
    # the smallest default (v5e: 16 MiB); keep it well below v7x's 64 MiB.
    needed = _vmem_bytes(tile_n, tile_c)
    vmem_limit = None
    if needed > 12 * 1024 * 1024:
        vmem_limit = min(int(needed * 1.5), 48 * 1024 * 1024)

    kernel = functools.partial(
        _adms_kernel, s=float(s), ml=float(ml), ms=float(ms),
        threshold=int(real_label_max), n_valid=n, c_valid=c, tile_c=tile_c,
        mask_rows=(n_pad != n), mask_cols=(c_pad != c))

    per_row = pl.pallas_call(
        kernel,
        out_shape=jax.ShapeDtypeStruct((n_pad, 1), jnp.float32),
        grid_spec=pltpu.PrefetchScalarGridSpec(
            num_scalar_prefetch=0,
            grid=grid,
            in_specs=[
                pl.BlockSpec((tile_n, d), lambda i, j: (i, 0)),   # normalized x rows
                pl.BlockSpec((d, tile_c), lambda i, j: (0, j)),   # normalized W^T tile
                pl.BlockSpec((tile_n, 1), lambda i, j: (i, 0)),   # labels
            ],
            out_specs=pl.BlockSpec((tile_n, 1), lambda i, j: (i, 0)),
            scratch_shapes=[
                pltpu.VMEM((tile_n, 1), jnp.float32),   # target logit per row
                pltpu.VMEM((tile_n, 1), jnp.float32),   # running exp-sum per row
            ]),
        compiler_params=pltpu.CompilerParams(
            dimension_semantics=("parallel", "arbitrary"),
            vmem_limit_bytes=vmem_limit),
    )(xn, wt, lab2d)

    # Tiny final reduction (per-row losses -> scalar mean) stays in XLA.
    return -jnp.sum(per_row) / n


def _reference_loss(x, weight, labels, s=30.0, ml=0.4, ms=0.1):
    xn = x / jnp.maximum(jnp.linalg.norm(x, axis=1, keepdims=True), 1e-12)
    wn = weight / jnp.maximum(jnp.linalg.norm(weight, axis=1, keepdims=True), 1e-12)
    wf = jnp.clip(xn @ wn.T, -1.0, 1.0)
    target = wf[jnp.arange(x.shape[0]), labels]
    m = jnp.where(labels <= 5, ml, ms)
    numerator = s * (target - m)
    onehot = jax.nn.one_hot(labels, weight.shape[0], dtype=jnp.float32)
    excl = jnp.sum(jnp.exp(s * wf) * (1.0 - onehot), axis=1)
    denom = jnp.exp(numerator) + excl
    return -jnp.mean(numerator - jnp.log(denom))


if __name__ == "__main__":
    key = jax.random.PRNGKey(0)
    k_x, k_w, k_lab = jax.random.split(key, 3)

    N, IN_FEATURES, OUT_FEATURES = 8, 32, 16

    x = jax.random.normal(k_x, (N, IN_FEATURES), dtype=jnp.float32)
    # xavier_uniform_ init for weight (out_features, in_features)
    bound = math.sqrt(6.0 / (IN_FEATURES + OUT_FEATURES))
    weight = jax.random.uniform(
        k_w, (OUT_FEATURES, IN_FEATURES), dtype=jnp.float32,
        minval=-bound, maxval=bound)
    labels = jax.random.randint(k_lab, (N,), 0, OUT_FEATURES, dtype=jnp.int32)

    ref = _reference_loss(x, weight, labels)

    # Exact-parity path (f32 operands, reference-identical masked denominator).
    loss_f32 = adms_softmax_loss(x, weight, labels, compute_dtype=jnp.float32)
    jax.block_until_ready(loss_f32)
    assert jnp.allclose(loss_f32, ref, rtol=1e-4, atol=1e-4), (loss_f32, ref)

    # Fast path (bf16 W / x stream): ~0.4% operand error amplified by s=30,
    # so comparison against the f32 reference is at the few-percent level.
    loss_bf16 = adms_softmax_loss(x, weight, labels)
    jax.block_until_ready(loss_bf16)
    assert jnp.allclose(loss_bf16, ref, rtol=5e-2, atol=5e-2), (loss_bf16, ref)

    print("KERNEL_OK")
</pallas_src>

<mosaic_0001>
module attributes {stable_mosaic.version = 11 : i64} {
  func.func @_adms_kernel(%arg0: i32, %arg1: i32, %arg2: memref<8x32xf32, #tpu.memory_space<vmem>>, %arg3: memref<32x128xf32, #tpu.memory_space<vmem>>, %arg4: memref<8x1xi32, #tpu.memory_space<vmem>>, %arg5: memref<8x1xf32, #tpu.memory_space<vmem>>, %arg6: memref<8x1xf32, #tpu.memory_space<vmem>>, %arg7: memref<8x1xf32, #tpu.memory_space<vmem>>) attributes {dimension_semantics = [#tpu.dimension_semantics<parallel>, #tpu.dimension_semantics<arbitrary>], iteration_bounds = array<i64: 1, 1>, scalar_prefetch = 0 : i64, scratch_operands = 2 : i64, tpu.core_type = #tpu.core_type<tc>, window_params = [{transform_indices = @transform_0, window_bounds = array<i64: 8, 32>}, {transform_indices = @transform_1, window_bounds = array<i64: 32, 128>}, {transform_indices = @transform_2, window_bounds = array<i64: 8, 1>}, {transform_indices = @transform_3, window_bounds = array<i64: 8, 1>}]} {
    %c0_i32 = arith.constant 0 : i32
    %0 = arith.cmpi eq, %arg1, %c0_i32 : i32
    %1 = arith.extui %0 : i1 to i32
    %c0_i32_0 = arith.constant 0 : i32
    %2 = arith.cmpi ne, %1, %c0_i32_0 : i32
    scf.if %2 {
      %cst_24 = arith.constant 0.000000e+00 : f32
      %41 = vector.broadcast %cst_24 : f32 to vector<8x1xf32>
      %c0_25 = arith.constant 0 : index
      %c0_26 = arith.constant 0 : index
      %42 = vector.load %arg6[%c0_25, %c0_26] : memref<8x1xf32, #tpu.memory_space<vmem>>, vector<8x1xf32>
      tpu.vector_store %arg6[%c0_25, %c0_26], %41 {strides = array<i32>} : memref<8x1xf32, #tpu.memory_space<vmem>>, vector<8x1xf32>,
      %cst_27 = arith.constant 0.000000e+00 : f32
      %43 = vector.broadcast %cst_27 : f32 to vector<8x1xf32>
      %c0_28 = arith.constant 0 : index
      %c0_29 = arith.constant 0 : index
      %44 = vector.load %arg7[%c0_28, %c0_29] : memref<8x1xf32, #tpu.memory_space<vmem>>, vector<8x1xf32>
      tpu.vector_store %arg7[%c0_28, %c0_29], %43 {strides = array<i32>} : memref<8x1xf32, #tpu.memory_space<vmem>>, vector<8x1xf32>,
    } else {
    }
    %c0 = arith.constant 0 : index
    %c0_1 = arith.constant 0 : index
    %3 = vector.load %arg2[%c0, %c0_1] : memref<8x32xf32, #tpu.memory_space<vmem>>, vector<8x32xf32>
    %c0_2 = arith.constant 0 : index
    %c0_3 = arith.constant 0 : index
    %4 = vector.load %arg3[%c0_2, %c0_3] : memref<32x128xf32, #tpu.memory_space<vmem>>, vector<32x128xf32>
    %cst = arith.constant dense<0.000000e+00> : vector<8x128xf32>
    %5 = tpu.matmul %3, %4, %cst {dimension_numbers = #tpu.dot_dimension_numbers<[1], [0], [0], [1], [0, 0, 1, 1], [], []>} : vector<8x32xf32>, vector<32x128xf32>, vector<8x128xf32> -> vector<8x128xf32>
    %cst_4 = arith.constant -1.000000e+00 : f32
    %cst_5 = arith.constant 1.000000e+00 : f32
    %6 = vector.broadcast %cst_4 : f32 to vector<8x128xf32>
    %7 = arith.maximumf %6, %5 : vector<8x128xf32>
    %8 = vector.broadcast %cst_5 : f32 to vector<8x128xf32>
    %9 = arith.minimumf %8, %7 : vector<8x128xf32>
    %c0_6 = arith.constant 0 : index
    %c0_7 = arith.constant 0 : index
    %10 = vector.load %arg4[%c0_6, %c0_7] : memref<8x1xi32, #tpu.memory_space<vmem>>, vector<8x1xi32>
    %c128_i32 = arith.constant 128 : i32
    %11 = arith.muli %arg1, %c128_i32 : i32
    %12 = tpu.iota {dimensions = array<i32: 1>} : vector<8x128xi32>
    %13 = vector.broadcast %11 : i32 to vector<8x128xi32>
    %14 = arith.addi %13, %12 : vector<8x128xi32>
    %15 = vector.broadcast %10 : vector<8x1xi32> to vector<8x128xi32>
    %16 = arith.cmpi eq, %14, %15 : vector<8x128xi32>
    %c0_8 = arith.constant 0 : index
    %c0_9 = arith.constant 0 : index
    %17 = vector.load %arg6[%c0_8, %c0_9] : memref<8x1xf32, #tpu.memory_space<vmem>>, vector<8x1xf32>
    %cst_10 = arith.constant 0.000000e+00 : f32
    %18 = vector.broadcast %cst_10 : f32 to vector<8x128xf32>
    %19 = arith.select %16, %9, %18 : vector<8x128xi1>, vector<8x128xf32>
    %cst_11 = arith.constant dense<0.000000e+00> : vector<8xf32>
    %20 = vector.multi_reduction <add>, %19, %cst_11 [1] : vector<8x128xf32> to vector<8xf32>
    %21 = vector.shape_cast %20 : vector<8xf32> to vector<8x1xf32>
    %22 = arith.addf %17, %21 : vector<8x1xf32>
    %c0_12 = arith.constant 0 : index
    %c0_13 = arith.constant 0 : index
    %23 = vector.load %arg6[%c0_12, %c0_13] : memref<8x1xf32, #tpu.memory_space<vmem>>, vector<8x1xf32>
    tpu.vector_store %arg6[%c0_12, %c0_13], %22 {strides = array<i32>} : memref<8x1xf32, #tpu.memory_space<vmem>>, vector<8x1xf32>,
    %cst_14 = arith.constant dense<true> : vector<8x128xi1>
    %24 = arith.xori %16, %cst_14 : vector<8x128xi1>
    %c16_i32 = arith.constant 16 : i32
    %25 = vector.broadcast %c16_i32 : i32 to vector<8x128xi32>
    %26 = arith.cmpi slt, %14, %25 : vector<8x128xi32>
    %27 = arith.andi %24, %26 : vector<8x128xi1>
    %c0_15 = arith.constant 0 : index
    %c0_16 = arith.constant 0 : index
    %28 = vector.load %arg7[%c0_15, %c0_16] : memref<8x1xf32, #tpu.memory_space<vmem>>, vector<8x1xf32>
    %cst_17 = arith.constant 3.000000e+01 : f32
    %29 = vector.broadcast %cst_17 : f32 to vector<8x128xf32>
    %30 = arith.mulf %29, %9 : vector<8x128xf32>
    %31 = math.exp %30 : vector<8x128xf32>
    %cst_18 = arith.constant 0.000000e+00 : f32
    %32 = vector.broadcast %cst_18 : f32 to vector<8x128xf32>
    %33 = arith.select %27, %31, %32 : vector<8x128xi1>, vector<8x128xf32>
    %cst_19 = arith.constant dense<0.000000e+00> : vector<8xf32>
    %34 = vector.multi_reduction <add>, %33, %cst_19 [1] : vector<8x128xf32> to vector<8xf32>
    %35 = vector.shape_cast %34 : vector<8xf32> to vector<8x1xf32>
    %36 = arith.addf %28, %35 : vector<8x1xf32>
    %c0_20 = arith.constant 0 : index
    %c0_21 = arith.constant 0 : index
    %37 = vector.load %arg7[%c0_20, %c0_21] : memref<8x1xf32, #tpu.memory_space<vmem>>, vector<8x1xf32>
    tpu.vector_store %arg7[%c0_20, %c0_21], %36 {strides = array<i32>} : memref<8x1xf32, #tpu.memory_space<vmem>>, vector<8x1xf32>,
    %c0_i32_22 = arith.constant 0 : i32
    %38 = arith.cmpi eq, %arg1, %c0_i32_22 : i32
    %39 = arith.extui %38 : i1 to i32
    %c0_i32_23 = arith.constant 0 : i32
    %40 = arith.cmpi ne, %39, %c0_i32_23 : i32
    scf.if %40 {
      %c5_i32 = arith.constant 5 : i32
      %41 = vector.broadcast %c5_i32 : i32 to vector<8x1xi32>
      %42 = arith.cmpi sle, %10, %41 : vector<8x1xi32>
      %cst_24 = arith.constant 4.000000e-01 : f32
      %cst_25 = arith.constant 1.000000e-01 : f32
      %43 = vector.broadcast %cst_24 : f32 to vector<8x1xf32>
      %44 = vector.broadcast %cst_25 : f32 to vector<8x1xf32>
      %45 = arith.select %42, %43, %44 : vector<8x1xi1>, vector<8x1xf32>
      %c0_26 = arith.constant 0 : index
      %c0_27 = arith.constant 0 : index
      %46 = vector.load %arg6[%c0_26, %c0_27] : memref<8x1xf32, #tpu.memory_space<vmem>>, vector<8x1xf32>
      %47 = arith.subf %46, %45 : vector<8x1xf32>
      %cst_28 = arith.constant 3.000000e+01 : f32
      %48 = vector.broadcast %cst_28 : f32 to vector<8x1xf32>
      %49 = arith.mulf %48, %47 : vector<8x1xf32>
      %50 = math.exp %49 : vector<8x1xf32>
      %c0_29 = arith.constant 0 : index
      %c0_30 = arith.constant 0 : index
      %51 = vector.load %arg7[%c0_29, %c0_30] : memref<8x1xf32, #tpu.memory_space<vmem>>, vector<8x1xf32>
      %52 = arith.addf %50, %51 : vector<8x1xf32>
      %53 = math.log %52 : vector<8x1xf32>
      %54 = arith.subf %49, %53 : vector<8x1xf32>
      %c0_31 = arith.constant 0 : index
      %c0_32 = arith.constant 0 : index
      %55 = vector.load %arg5[%c0_31, %c0_32] : memref<8x1xf32, #tpu.memory_space<vmem>>, vector<8x1xf32>
      tpu.vector_store %arg5[%c0_31, %c0_32], %54 {strides = array<i32>} : memref<8x1xf32, #tpu.memory_space<vmem>>, vector<8x1xf32>,
    } else {
    }
    return
  }
  func.func @transform_0(%arg0: i32, %arg1: i32) -> (i32, i32) {
    %c0_i32 = arith.constant 0 : i32
    %c0_i32_0 = arith.constant 0 : i32
    return %arg0, %c0_i32 : i32, i32
  }
  func.func @transform_1(%arg0: i32, %arg1: i32) -> (i32, i32) {
    %c0_i32 = arith.constant 0 : i32
    %c0_i32_0 = arith.constant 0 : i32
    return %c0_i32, %arg1 : i32, i32
  }
  func.func @transform_2(%arg0: i32, %arg1: i32) -> (i32, i32) {
    %c0_i32 = arith.constant 0 : i32
    %c0_i32_0 = arith.constant 0 : i32
    return %arg0, %c0_i32 : i32, i32
  }
  func.func @transform_3(%arg0: i32, %arg1: i32) -> (i32, i32) {
    %c0_i32 = arith.constant 0 : i32
    %c0_i32_0 = arith.constant 0 : i32
    return %arg0, %c0_i32 : i32, i32
  }
}

</mosaic_0001>

<llo_original>
// kernel: tpu_custom_call.1
$region0: #{tpu_custom_call.1}
  #allocation0 [shape = 'u32[]', space=smem, size = 0x4, offset = 0x4, fixed_abs, tag = 'smem constant byte address 0x4 - core index']
  #allocation1 [shape = 'u32[144,128]{1,0:T(1,128)}', space=vmem, size = 0x12000, scoped, tag = 'internal scratch']
  #allocation2 [shape = 'f32[8,1]{1,0:T(8,128)}', space=vmem, size = 0x1000, scoped, tag = 'scratch operand']
  #allocation3 [shape = 'f32[8,1]{1,0:T(8,128)}', space=vmem, size = 0x1000, scoped, tag = 'scratch operand']
  %s0 = inlined_call_operand.vmem [shape: f32[8,32], index: 0, kind: input, shape index: {}]
  %s1 = inlined_call_operand.hbm [shape: f32[32,128], index: 1, kind: input, shape index: {}]
  %s2 = inlined_call_operand.vmem [shape: s32[8,1], index: 2, kind: input, shape index: {}]
  %s3 = inlined_call_operand.vmem [shape: f32[8,1], index: 3, kind: output, shape index: {}]
  %s4 = sld [smem:[#allocation0]]
  $region34: #{tpu_custom_call.1} parent=0
    _
  %s6 = ssub.s32 1, %s4
  %s7 = scalar_select 0, %s6, %s4
  $region1: #{tpu_custom_call.1} parent=0
    #allocation4 [shape = 'u8[16384]{0}', space=vmem, size = 0x4000, scoped, tag = 'input window, operand 1, single buffered']
    #allocation5 [shape = 's32[1]{0}', space=sflag, size = 0x4, scoped, tag = 'scoped memory for tpu_custom_call.1']
    %8 = vsyncpa [#allocation5], 0
    // Predicated region
    $region2: #{tpu_custom_call.1} parent=1 // pred_check
      _
    $region3: #{tpu_custom_call.1} parent=1 // pred_check_branch
      %10 = sbr.rel (0) target = $region5
    $region4: #{tpu_custom_call.1} parent=1 // pred_region
      _
    $region5: #{tpu_custom_call.1} parent=1 // pred_fallthru
      _
    // Predicated region
    $region6: #{tpu_custom_call.1} parent=1 // pred_check
      _
    $region7: #{tpu_custom_call.1} parent=1 // pred_check_branch
      %12 = sbr.rel (0) target = $region9
    $region8: #{tpu_custom_call.1} parent=1 // pred_region
      %s14 = ssub.s32 512, 512
      %15 = vsyncadd [#allocation5], %s14
      %s16 = sshll.u32 [#allocation4], 4
      %s17 = int_to_ptr.vmem [resolvable:$true] %s16
      %22 = dma.hbm_to_vmem [thread:$0]  %s1, 512, %s17, [#allocation5], 128, 128, 8
    $region9: #{tpu_custom_call.1} parent=1 // pred_fallthru
      _
    // Predicated region
    $region10: #{tpu_custom_call.1} parent=1 // pred_check
      _
    $region11: #{tpu_custom_call.1} parent=1 // pred_check_branch
      %24 = sbr.rel (0) target = $region13
    $region12: #{tpu_custom_call.1} parent=1 // pred_region
      _
    $region13: #{tpu_custom_call.1} parent=1 // pred_fallthru
      _
    // Predicated region
    $region14: #{tpu_custom_call.1} parent=1 // pred_check
      _
    $region15: #{tpu_custom_call.1} parent=1 // pred_check_branch
      %26 = sbr.rel (0) target = $region17
    $region16: #{tpu_custom_call.1} parent=1 // pred_region
      %27 = dma.done [#allocation5], 512
    $region17: #{tpu_custom_call.1} parent=1 // pred_fallthru
      _
    %p28 = scmp.eq.s32.totalorder 0, 0
    // Predicated region
    $region18: #{tpu_custom_call.1} parent=1 // pred_check
      %p29 = pneg %p28
    $region19: #{tpu_custom_call.1} parent=1 // pred_check_branch
      %31 = sbr.rel (%p29) target = $region21
    $region20: #{tpu_custom_call.1} parent=1 // pred_region
      %vm32 = vcmask 7168
      %33 = vst.msk [vmem:[#allocation2] sm:$0xff] %vm32, 0.0
      %34 = vst.msk [vmem:[#allocation3] sm:$0xff] %vm32, 0.0
    $region21: #{tpu_custom_call.1} parent=1 // pred_fallthru
      _
    %v35 = vld [vmem:[%s0] sm:$0xff]
    %v36 = vld [vmem:[#allocation4] sm:$0xff]
    %v37 = vld [vmem:[#allocation4 + $0x8] sm:$0xff]
    %v38 = vld [vmem:[#allocation4 + $0x10] sm:$0xff]
    %v39 = vld [vmem:[#allocation4 + $0x18] sm:$0xff]
    %vm40 = vcmask 261120
    %v42 = vsel %vm40, %v35, 0
    %44 = vmatprep.subr.mxu0 0.0
    %45 = vmatpush1.msra.mxu0 %v36
    %46 = vmatprep.subr.mxu0 0.0
    %47 = vmatpush1.msra.mxu0 %v37
    %48 = vmatprep.subr.mxu0 0.0
    %49 = vmatpush1.msra.mxu0 %v38
    %50 = vmatprep.subr.mxu0 0.0
    %51 = vmatpush1.msra.mxu0 %v39
    %52 = vmatprep.subr.mxu0 0.0
    %53 = vmatpush1.msra.mxu0 0.0
    %54 = vmatprep.subr.mxu0 0.0
    %55 = vmatpush1.msra.mxu0 0.0
    %56 = vmatprep.subr.mxu0 0.0
    %57 = vmatpush1.msra.mxu0 0.0
    %58 = vmatprep.subr.mxu0 0.0
    %59 = vmatpush1.msra.mxu0 0.0
    %60 = vmatprep.subr.mxu0 0.0
    %61 = vmatpush1.msra.mxu0 0.0
    %62 = vmatprep.subr.mxu0 0.0
    %63 = vmatpush1.msra.mxu0 0.0
    %64 = vmatprep.subr.mxu0 0.0
    %65 = vmatpush1.msra.mxu0 0.0
    %66 = vmatprep.subr.mxu0 0.0
    %67 = vmatpush1.msra.mxu0 0.0
    %68 = vmatprep.subr.mxu0 0.0
    %69 = vmatpush1.msra.mxu0 0.0
    %70 = vmatprep.subr.mxu0 0.0
    %71 = vmatpush1.msra.mxu0 0.0
    %72 = vmatprep.subr.mxu0 0.0
    %73 = vmatpush1.msra.mxu0 0.0
    %74 = vmatprep.subr.mxu0 0.0
    %75 = vmatpush1.msra.mxu0 0.0
    %76 = vmatprep.subr.mxu0 0.0
    %77 = vmatpush1.msra.mxu0 0.0
    %78 = vmatprep.subr.mxu0 0.0
    %79 = vmatpush1.msra.mxu0 0.0
    %80 = vmatprep.subr.mxu0 0.0
    %81 = vmatpush1.msra.mxu0 0.0
    %82 = vmatprep.subr.mxu0 0.0
    %83 = vmatpush1.msra.mxu0 0.0
    %84 = vmatprep.subr.mxu0 0.0
    %85 = vmatpush1.msra.mxu0 0.0
    %86 = vmatprep.subr.mxu0 0.0
    %87 = vmatpush1.msra.mxu0 0.0
    %88 = vmatprep.subr.mxu0 0.0
    %89 = vmatpush1.msra.mxu0 0.0
    %90 = vmatprep.subr.mxu0 0.0
    %91 = vmatpush1.msra.mxu0 0.0
    %92 = vmatprep.subr.mxu0 0.0
    %93 = vmatpush1.msra.mxu0 0.0
    %94 = vmatprep.subr.mxu0 0.0
    %95 = vmatpush1.msra.mxu0 0.0
    %96 = vmatprep.subr.mxu0 0.0
    %97 = vmatpush1.msra.mxu0 0.0
    %98 = vmatprep.subr.mxu0 0.0
    %99 = vmatpush1.msra.mxu0 0.0
    %100 = vmatprep.subr.mxu0 0.0
    %101 = vmatpush1.msra.mxu0 0.0
    %102 = vmatprep.subr.mxu0 0.0
    %103 = vmatpush1.msra.mxu0 0.0
    %104 = vmatprep.subr.mxu0 0.0
    %105 = vmatpush1.msra.mxu0 0.0
    %106 = vmatprep.subr.mxu0 0.0
    %107 = vmatpush1.msra.mxu0 0.0
    %108 = vmatprep.mubr.f32.mxu0 0.0
    %109 = vmatmul.mubr.f32.gmra.mrb[0].mxu0 %v42
    %v110 = vpop.f32.mrb[0].mxu0
    %v111 = vadd.f32 0.0, %v110
    %v112 = vpop.f32.mrb[0].mxu0
    %113 = vdwg.mxu0
    %v114 = vmax.f32 %v111, -1.0
    %v115 = vmin.f32 %v114, 1.0
    %v116 = vld [vmem:[%s2] sm:$0xff]
    %s117 = smul.u32 0, 128
    %v118 = vlaneseq
    %v119 = vand.u32 %v118, 127
    %v120 = vstv %s117
    %v121 = vadd.s32 %v120, %v119
    %122 = vset.pattern.permute.xlu0 0
    %123 = vperm.xlu0 %122, %v116
    %v124 = vpop.permute.xlu0 %123
    %vm125 = vcmp.eq.s32.totalorder %v121, %v124
    %v126 = vld [vmem:[#allocation2] sm:$0xff]
    %v127 = vsel %vm125, %v115, 0.0
    %128 = vadd.xlane.f32.xlu0 %v127
    %v129 = vpop.xlane.xlu0 %128
    %v130 = vadd.f32 %v126, %v129
    %vm131 = vcmask 7168
    %132 = vst.msk [vmem:[#allocation2] sm:$0xff] %vm131, %v130
    %vm133 = vmxor %vm125, 1
    %vm134 = vcmp.lt.s32.totalorder %v121, 16
    %vm135 = vmand %vm133, %vm134
    %v136 = vld [vmem:[#allocation3] sm:$0xff]
    %v137 = vmul.f32 %v115, 30.0
    %v138 = vmul.f32 %v137, 1.442695
    %v139 = vpow.pop %v138
    %v140 = vsel %vm135, %v139, 0.0
    %141 = vadd.xlane.f32.xlu0 %v140
    %v142 = vpop.xlane.xlu0 %141
    %v143 = vadd.f32 %v136, %v142
    %144 = vst.msk [vmem:[#allocation3] sm:$0xff] %vm131, %v143
    // Predicated region
    $region22: #{tpu_custom_call.1} parent=1 // pred_check
      %p145 = pneg %p28
    $region23: #{tpu_custom_call.1} parent=1 // pred_check_branch
      %147 = sbr.rel (%p145) target = $region25
    $region24: #{tpu_custom_call.1} parent=1 // pred_region
      %vm148 = vcmp.le.s32.totalorder %v116, 5
      %v149 = vsel %vm148, 0.4, 0.1
      %v150 = vld [vmem:[#allocation2] sm:$0xff]
      %v151 = vsub.f32 %v150, %v149
      %v152 = vmul.f32 %v151, 30.0
      %v153 = vmul.f32 %v152, 1.442695
      %v154 = vpow.pop %v153
      %v155 = vld [vmem:[#allocation3] sm:$0xff]
      %v156 = vadd.f32 %v154, %v155
      %v157 = vlog2.pop %v156
      %v158 = vmul.f32 %v157, 0.6931472
      %v159 = vsub.f32 %v152, %v158
      %160 = vst.msk [vmem:[%s3] sm:$0xff] %vm131, %v159
    $region25: #{tpu_custom_call.1} parent=1 // pred_fallthru
      _
    // Predicated region
    $region26: #{tpu_custom_call.1} parent=1 // pred_check
      _
    $region27: #{tpu_custom_call.1} parent=1 // pred_check_branch
      %162 = sbr.rel (0) target = $region29
    $region28: #{tpu_custom_call.1} parent=1 // pred_region
      _
    $region29: #{tpu_custom_call.1} parent=1 // pred_fallthru
      _
    // Predicated region
    $region30: #{tpu_custom_call.1} parent=1 // pred_check
      _
    $region31: #{tpu_custom_call.1} parent=1 // pred_check_branch
      %164 = sbr.rel (0) target = $region33
    $region32: #{tpu_custom_call.1} parent=1 // pred_region
      _
    $region33: #{tpu_custom_call.1} parent=1 // pred_fallthru
      _
    %165 = vsyncpa [#allocation5], 1

</llo_original>
